<compile_context>
chip_gen: v5e
topology: v5e:2x2
jax: 0.10.0
libtpu: 0.0.40
codegen_flags: <defaults>
</compile_context>

<pallas_src>
import jax
import jax.numpy as jnp
import numpy as np
from jax.experimental import pallas as pl
from jax.experimental.pallas import tpu as pltpu


def _down_wt_kernel(x_ref, w_ref, b_ref, o_ref):
    """One fused step: o = relu(W @ x + b), channel-major.

    x : (4*Cin, ts)      quadrant-merged input tile, spatial on lanes
    w : (Cout_p, 4*Cin)  Haar + BN-scale folded 1x1-conv weight
    b : (Cout_p, 1)      folded shift (conv bias + BN)
    o : (Cout_p, ts)
    """
    y = jnp.dot(w_ref[...], x_ref[...], preferred_element_type=jnp.float32)
    o_ref[...] = jnp.maximum(y + b_ref[...], 0.0).astype(o_ref.dtype)


def _vmem_budget_bytes():
    """Chip-aware VMEM budget (v5e/v6e: 128 MiB physical, v7x: 64 MiB per TC)."""
    try:
        cap = pltpu.get_tpu_info().vmem_capacity_bytes
    except Exception:
        cap = 64 << 20                      # conservative (v7x-sized) fallback
    return int(min(cap // 2, 64 << 20))


def _choose_ts(S, K4, Cp, n_batch, budget):
    """Spatial (lane) tile: as large as the VMEM budget allows, lane-dense
    (multiple of 128 or the full dim), balanced across grid steps, >= 2 steps."""
    per_lane = 2 * 4 * (K4 + Cp)                 # double-buffered in + out blocks (f32)
    fixed = 2 * 4 * (Cp * K4 + Cp * 128)         # double-buffered resident weight + bias
    ts = (budget * 3 // 4 - fixed) // per_lane
    ts = max(128, min(ts, 1 << 16))
    if ts >= S:
        ts = S                                   # full dim satisfies the (8,128) rule
        if n_batch < 2 and S > 256:              # keep both v7x TensorCores busy
            ts = ((pl.cdiv(S, 2) + 127) // 128) * 128
    else:
        ts = (ts // 128) * 128
        n_s = pl.cdiv(S, ts)
        ts = ((pl.cdiv(S, n_s) + 127) // 128) * 128   # balance tiles (no tiny ragged tail)
    return int(ts)


def down_wt_forward(x, conv_w, conv_b, bn_gamma, bn_beta, bn_mean, bn_var, eps=1e-5):
    """x: (B, Cin, H, W) float32 NCHW.  Returns (B, Cout, H//2, W//2) float32."""
    B, Cin, H, W = x.shape
    Cout = conv_w.shape[0]
    assert H % 2 == 0 and W % 2 == 0
    H2, W2 = H // 2, W // 2
    S = H2 * W2
    K4 = 4 * Cin

    # ---- space-to-depth (single fused XLA pass): (B,Cin,H,W) -> (B, 4*Cin, H2*W2),
    # channel-block order [a, b, c, d] with a=(h even, w even), b=(h even, w odd),
    # c=(h odd, w even), d=(h odd, w odd).
    xq = x.reshape(B, Cin, H2, 2, W2, 2)
    xq = jnp.transpose(xq, (0, 3, 5, 1, 2, 4)).reshape(B, K4, S).astype(jnp.float32)

    # ---- fold Haar analysis + BN scale into the 1x1-conv weight.
    # pytorch_wavelets DWTForward (J=1, mode='zero', wave='haar'):
    #   yL  = (a + b + c + d) / 2     module concat order: [yL, yH0, yH1, yH2]
    #   yH0 = (a + b - c - d) / 2
    #   yH1 = (a - b + c - d) / 2
    #   yH2 = (a - b - c + d) / 2
    # TODO(synk): verify detail-band order/sign vs pytorch_wavelets before loading
    # pretrained conv weights; the self-test only checks against down_wt_reference.
    w = conv_w.reshape(Cout, 4, Cin).astype(jnp.float32)   # (Cout, [LL,H0,H1,H2], Cin)
    w_ll, w_h0, w_h1, w_h2 = w[:, 0], w[:, 1], w[:, 2], w[:, 3]
    wa = 0.5 * (w_ll + w_h0 + w_h1 + w_h2)
    wb = 0.5 * (w_ll + w_h0 - w_h1 - w_h2)
    wc = 0.5 * (w_ll - w_h0 + w_h1 - w_h2)
    wd = 0.5 * (w_ll - w_h0 - w_h1 + w_h2)
    w_t = jnp.concatenate([wa, wb, wc, wd], axis=1)         # (Cout, 4*Cin), [a|b|c|d] cols

    scale = bn_gamma / jnp.sqrt(bn_var + eps)                # (Cout,)
    shift = (conv_b - bn_mean) * scale + bn_beta             # (Cout,)
    w_t = w_t * scale[:, None]                               # BN scale folded into weight

    # ---- Cout only needs sublane padding (multiple of 8), not 128.
    Cp = max(8, ((Cout + 7) // 8) * 8)
    w_pad = jnp.zeros((Cp, K4), jnp.float32).at[:Cout, :].set(w_t)
    b_pad = jnp.zeros((Cp, 1), jnp.float32).at[:Cout, 0].set(shift.astype(jnp.float32))

    # ---- tiling over the flattened spatial dim (lanes); partial last block OK.
    budget = _vmem_budget_bytes()
    ts = _choose_ts(S, K4, Cp, B, budget)
    grid = (B, pl.cdiv(S, ts))

    cost = pl.CostEstimate(
        flops=2 * B * S * K4 * Cp,
        transcendentals=0,
        bytes_accessed=4 * (B * K4 * S + Cp * K4 + Cp + B * Cp * S),
    )

    out = pl.pallas_call(
        _down_wt_kernel,
        out_shape=jax.ShapeDtypeStruct((B, Cp, S), jnp.float32),
        grid=grid,
        in_specs=[
            pl.BlockSpec((None, K4, ts), lambda b, s: (b, 0, s)),
            pl.BlockSpec((Cp, K4), lambda b, s: (0, 0)),
            pl.BlockSpec((Cp, 1), lambda b, s: (0, 0)),
        ],
        out_specs=pl.BlockSpec((None, Cp, ts), lambda b, s: (b, 0, s)),
        compiler_params=pltpu.CompilerParams(
            dimension_semantics=("parallel", "parallel"),
            vmem_limit_bytes=int(budget),
        ),
        cost_estimate=cost,
    )(xq, w_pad, b_pad)

    # Channel-major output: dropping the (possible) sublane padding rows and the
    # reshape are metadata-only (no padding at all when Cout % 8 == 0).
    return out[:, :Cout, :].reshape(B, Cout, H2, W2)


def down_wt_reference(x, conv_w, conv_b, bn_gamma, bn_beta, bn_mean, bn_var, eps=1e-5):
    """Plain-JAX reference of the same forward pass (for validation)."""
    a = x[:, :, 0::2, 0::2]
    b = x[:, :, 0::2, 1::2]
    c = x[:, :, 1::2, 0::2]
    d = x[:, :, 1::2, 1::2]
    ll = (a + b + c + d) * 0.5
    h0 = (a + b - c - d) * 0.5
    h1 = (a - b + c - d) * 0.5
    h2 = (a - b - c + d) * 0.5
    feat = jnp.concatenate([ll, h0, h1, h2], axis=1)              # (B, 4*Cin, H2, W2)
    y = jnp.einsum("bchw,oc->bohw", feat, conv_w.reshape(conv_w.shape[0], -1))
    y = y + conv_b[None, :, None, None]
    y = (y - bn_mean[None, :, None, None]) / jnp.sqrt(bn_var[None, :, None, None] + eps)
    y = y * bn_gamma[None, :, None, None] + bn_beta[None, :, None, None]
    return jnp.maximum(y, 0.0)


if __name__ == "__main__":
    B, Cin, H, W = 2, 4, 16, 16
    Cout = 8

    key = jax.random.PRNGKey(0)
    kx, kw, kb, kg, kbe, km, kv = jax.random.split(key, 7)

    x = jax.random.normal(kx, (B, Cin, H, W), dtype=jnp.float32)

    # Deterministic synthetic parameters (shapes from the module's __init__).
    conv_w = jax.random.normal(kw, (Cout, 4 * Cin, 1, 1), dtype=jnp.float32) * 0.1
    conv_b = jax.random.normal(kb, (Cout,), dtype=jnp.float32) * 0.1
    bn_gamma = 1.0 + 0.1 * jax.random.normal(kg, (Cout,), dtype=jnp.float32)
    bn_beta = 0.1 * jax.random.normal(kbe, (Cout,), dtype=jnp.float32)
    bn_mean = 0.1 * jax.random.normal(km, (Cout,), dtype=jnp.float32)
    bn_var = 1.0 + 0.1 * jax.random.uniform(kv, (Cout,), dtype=jnp.float32)

    fwd = jax.jit(down_wt_forward)
    out = jax.block_until_ready(
        fwd(x, conv_w, conv_b, bn_gamma, bn_beta, bn_mean, bn_var))

    ref = jax.block_until_ready(
        down_wt_reference(x, conv_w, conv_b, bn_gamma, bn_beta, bn_mean, bn_var))

    assert out.shape == (B, Cout, H // 2, W // 2), out.shape
    np.testing.assert_allclose(np.asarray(out), np.asarray(ref), rtol=1e-4, atol=1e-5)

    print("KERNEL_OK")
</pallas_src>

<mosaic_0001>
module attributes {stable_mosaic.version = 11 : i64} {
  func.func @_down_wt_kernel(%arg0: i32, %arg1: i32, %arg2: memref<1x16x64xf32, #tpu.memory_space<vmem>>, %arg3: memref<8x16xf32, #tpu.memory_space<vmem>>, %arg4: memref<8x1xf32, #tpu.memory_space<vmem>>, %arg5: memref<1x8x64xf32, #tpu.memory_space<vmem>>) attributes {dimension_semantics = [#tpu.dimension_semantics<parallel>, #tpu.dimension_semantics<parallel>], iteration_bounds = array<i64: 2, 1>, scalar_prefetch = 0 : i64, scratch_operands = 0 : i64, tpu.core_type = #tpu.core_type<tc>, window_params = [{transform_indices = @transform_0, window_bounds = array<i64: 1, 16, 64>}, {pipeline_mode = #tpu.pipeline_mode<synchronous>, transform_indices = @transform_1, window_bounds = array<i64: 8, 16>}, {pipeline_mode = #tpu.pipeline_mode<synchronous>, transform_indices = @transform_2, window_bounds = array<i64: 8, 1>}, {transform_indices = @transform_3, window_bounds = array<i64: 1, 8, 64>}]} {
    %c0 = arith.constant 0 : index
    %c0_0 = arith.constant 0 : index
    %0 = vector.load %arg3[%c0, %c0_0] : memref<8x16xf32, #tpu.memory_space<vmem>>, vector<8x16xf32>
    %c0_1 = arith.constant 0 : index
    %c0_2 = arith.constant 0 : index
    %c0_3 = arith.constant 0 : index
    %1 = vector.load %arg2[%c0_1, %c0_2, %c0_3] : memref<1x16x64xf32, #tpu.memory_space<vmem>>, vector<1x16x64xf32>
    %2 = vector.shape_cast %1 : vector<1x16x64xf32> to vector<16x64xf32>
    %cst = arith.constant dense<0.000000e+00> : vector<8x64xf32>
    %3 = tpu.matmul %0, %2, %cst {dimension_numbers = #tpu.dot_dimension_numbers<[1], [0], [0], [1], [0, 0, 1, 1], [], []>} : vector<8x16xf32>, vector<16x64xf32>, vector<8x64xf32> -> vector<8x64xf32>
    %c0_4 = arith.constant 0 : index
    %c0_5 = arith.constant 0 : index
    %4 = vector.load %arg4[%c0_4, %c0_5] : memref<8x1xf32, #tpu.memory_space<vmem>>, vector<8x1xf32>
    %5 = vector.broadcast %4 : vector<8x1xf32> to vector<8x64xf32>
    %6 = arith.addf %3, %5 : vector<8x64xf32>
    %cst_6 = arith.constant 0.000000e+00 : f32
    %7 = vector.broadcast %cst_6 : f32 to vector<8x64xf32>
    %8 = arith.maximumf %6, %7 : vector<8x64xf32>
    %c0_7 = arith.constant 0 : index
    %c0_8 = arith.constant 0 : index
    %c0_9 = arith.constant 0 : index
    %9 = vector.load %arg5[%c0_7, %c0_8, %c0_9] : memref<1x8x64xf32, #tpu.memory_space<vmem>>, vector<1x8x64xf32>
    %10 = vector.shape_cast %9 : vector<1x8x64xf32> to vector<8x64xf32>
    %11 = vector.shape_cast %8 : vector<8x64xf32> to vector<1x8x64xf32>
    tpu.vector_store %arg5[%c0_7, %c0_8, %c0_9], %11 {strides = array<i32>} : memref<1x8x64xf32, #tpu.memory_space<vmem>>, vector<1x8x64xf32>,
    return
  }
  func.func @transform_0(%arg0: i32, %arg1: i32) -> (i32, i32, i32) {
    %c0_i32 = arith.constant 0 : i32
    %c0_i32_0 = arith.constant 0 : i32
    return %arg0, %c0_i32, %arg1 : i32, i32, i32
  }
  func.func @transform_1(%arg0: i32, %arg1: i32) -> (i32, i32) {
    %c0_i32 = arith.constant 0 : i32
    %c0_i32_0 = arith.constant 0 : i32
    %c0_i32_1 = arith.constant 0 : i32
    return %c0_i32, %c0_i32_0 : i32, i32
  }
  func.func @transform_2(%arg0: i32, %arg1: i32) -> (i32, i32) {
    %c0_i32 = arith.constant 0 : i32
    %c0_i32_0 = arith.constant 0 : i32
    %c0_i32_1 = arith.constant 0 : i32
    return %c0_i32, %c0_i32_0 : i32, i32
  }
  func.func @transform_3(%arg0: i32, %arg1: i32) -> (i32, i32, i32) {
    %c0_i32 = arith.constant 0 : i32
    %c0_i32_0 = arith.constant 0 : i32
    return %arg0, %c0_i32, %arg1 : i32, i32, i32
  }
}

</mosaic_0001>

<llo_original>
// kernel: down_wt_forward.1
$region0: #{down_wt_forward.1}
  #allocation0 [shape = 'u32[]', space=smem, size = 0x4, offset = 0x4, fixed_abs, tag = 'smem constant byte address 0x4 - core index']
  #allocation1 [shape = 'u32[72,128]{1,0:T(1,128)}', space=vmem, size = 0x9000, scoped, tag = 'internal scratch']
  %s0 = inlined_call_operand.vmem [shape: f32[2,16,64], index: 0, kind: input, shape index: {}]
  %s1 = inlined_call_operand.vmem [shape: f32[8,16], index: 1, kind: input, shape index: {}]
  %s2 = inlined_call_operand.vmem [shape: f32[8,1], index: 2, kind: input, shape index: {}]
  %s3 = inlined_call_operand.vmem [shape: f32[2,8,64], index: 3, kind: output, shape index: {}]
  %s4 = sld [smem:[#allocation0]]
  $region45: #{down_wt_forward.1} parent=0
    _
  %s6 = ssub.s32 1, %s4
  %s7 = scalar_select 0, %s6, %s4
  loop: start=0, step=1, limit=4
  $region2: #{down_wt_forward.1} parent=0 // loop_pre_header
    _
  $region3: #{down_wt_forward.1} parent=0 // loop_header
    %s9 = sphi 0, %s13
    %p10 = scmp.ge.s32.totalorder %s9, 4
    %s16 = sphi 0, %s28
    %s17 = sphi 0, %s24
    %s18 = sphi 0, %s16
    %s19 = sphi 0, %s17
    %s20 = sphi 0, %s18
    %s21 = sphi 0, %s19
    %s33 = sphi 0, %s35
    %s36 = sphi 0, %s33
    %s37 = sphi 0, %s36
    %s53 = sphi 0, %s37
    %s57 = sphi 0, %s57
    %s59 = sphi 0, %s57
    %s60 = sphi 0, %s59
    %s74 = sphi 0, %s60
    %s78 = sphi 0, %s78
    %s80 = sphi 0, %s78
    %s81 = sphi 0, %s80
    %s95 = sphi 0, %s81
    %s103 = sphi 0, %s105
    %s106 = sphi 0, %s103
    %s107 = sphi 0, %s106
    %s123 = sphi 0, %s107
  $region4: #{down_wt_forward.1} parent=0 // loop_header_branch
    %12 = sbr.rel (%p10) target = $region8
  $region5: #{down_wt_forward.1} parent=0 // loop_body
    %s14 = ssub.s32 %s9, 1
    %s15 = ssub.s32 %s9, 2
    %s22 = sadd.s32 1, %s17
    %p23 = scmp.ge.s32.totalorder %s22, 1
    %s24 = scalar_select %p23, 0, %s22
    %s25 = sadd.s32 1, %s16
    %s26 = scalar_select %p23, %s25, %s16
    %p27 = scmp.ge.s32.totalorder %s26, 2
    %s28 = scalar_select %p27, 0, %s26
    %s29 = ssub.s32 %s16, %s28
    %s30 = ssub.s32 %s17, %s24
    %s31 = sor.u32 %s29, %s30
    %p32 = scmp.eq.s32.totalorder %s31, 0
    %s34 = sadd.s32 %s33, 1
    %s35 = scalar_select %p32, %s33, %s34
    %p38 = pneg %p32
    %p39 = scmp.eq.s32.totalorder %s9, 1
    %p40 = por %p38, %p39
    %p41 = scmp.ne.s32.totalorder %s33, %s36
    %p42 = scmp.eq.s32.totalorder %s9, 0
    %p43 = por %p41, %p42
    %p44 = scmp.ne.s32.totalorder %s33, %s36
    %p45 = scmp.eq.s32.totalorder %s14, 1
    %p46 = por %p44, %p45
    %p47 = scmp.ne.s32.totalorder %s36, %s37
    %p48 = scmp.eq.s32.totalorder %s14, 0
    %p49 = por %p47, %p48
    %p50 = scmp.ne.s32.totalorder %s36, %s37
    %p51 = scmp.eq.s32.totalorder %s15, 1
    %p52 = por %p50, %p51
    %p54 = scmp.ne.s32.totalorder %s37, %s53
    %p55 = scmp.eq.s32.totalorder %s15, 0
    %p56 = por %p54, %p55
    %s58 = sadd.s32 %s57, 1
    %p61 = scmp.eq.s32.totalorder %s9, 1
    %p62 = scmp.ne.s32.totalorder %s57, %s59
    %p63 = scmp.eq.s32.totalorder %s9, 0
    %p64 = por %p62, %p63
    %p65 = scmp.ne.s32.totalorder %s57, %s59
    %p66 = scmp.eq.s32.totalorder %s14, 1
    %p67 = por %p65, %p66
    %p68 = scmp.ne.s32.totalorder %s59, %s60
    %p69 = scmp.eq.s32.totalorder %s14, 0
    %p70 = por %p68, %p69
    %p71 = scmp.ne.s32.totalorder %s59, %s60
    %p72 = scmp.eq.s32.totalorder %s15, 1
    %p73 = por %p71, %p72
    %p75 = scmp.ne.s32.totalorder %s60, %s74
    %p76 = scmp.eq.s32.totalorder %s15, 0
    %p77 = por %p75, %p76
    %s79 = sadd.s32 %s78, 1
    %p82 = scmp.eq.s32.totalorder %s9, 1
    %p83 = scmp.ne.s32.totalorder %s78, %s80
    %p84 = scmp.eq.s32.totalorder %s9, 0
    %p85 = por %p83, %p84
    %p86 = scmp.ne.s32.totalorder %s78, %s80
    %p87 = scmp.eq.s32.totalorder %s14, 1
    %p88 = por %p86, %p87
    %p89 = scmp.ne.s32.totalorder %s80, %s81
    %p90 = scmp.eq.s32.totalorder %s14, 0
    %p91 = por %p89, %p90
    %p92 = scmp.ne.s32.totalorder %s80, %s81
    %p93 = scmp.eq.s32.totalorder %s15, 1
    %p94 = por %p92, %p93
    %p96 = scmp.ne.s32.totalorder %s81, %s95
    %p97 = scmp.eq.s32.totalorder %s15, 0
    %p98 = por %p96, %p97
    %s99 = ssub.s32 %s16, %s28
    %s100 = ssub.s32 %s17, %s24
    %s101 = sor.u32 %s99, %s100
    %p102 = scmp.eq.s32.totalorder %s101, 0
    %s104 = sadd.s32 %s103, 1
    %s105 = scalar_select %p102, %s103, %s104
    %p108 = pneg %p102
    %p109 = scmp.eq.s32.totalorder %s9, 1
    %p110 = por %p108, %p109
    %p111 = scmp.ne.s32.totalorder %s103, %s106
    %p112 = scmp.eq.s32.totalorder %s9, 0
    %p113 = por %p111, %p112
    %p114 = scmp.ne.s32.totalorder %s103, %s106
    %p115 = scmp.eq.s32.totalorder %s14, 1
    %p116 = por %p114, %p115
    %p117 = scmp.ne.s32.totalorder %s106, %s107
    %p118 = scmp.eq.s32.totalorder %s14, 0
    %p119 = por %p117, %p118
    %p120 = scmp.ne.s32.totalorder %s106, %s107
    %p121 = scmp.eq.s32.totalorder %s15, 1
    %p122 = por %p120, %p121
    %p124 = scmp.ne.s32.totalorder %s107, %s123
    %p125 = scmp.eq.s32.totalorder %s15, 0
    %p126 = por %p124, %p125
    %p127 = scmp.le.s32.totalorder 1, %s9
    %p128 = scmp.lt.s32.totalorder %s9, 3
    %p129 = pnand %p127, %p128
    %p130 = pneg %p129
    // Predicated region
    $region9: #{down_wt_forward.1} parent=5 // pred_check
      _
    $region10: #{down_wt_forward.1} parent=5 // pred_check_branch
      %132 = sbr.rel (%p129) target = $region12
    $region11: #{down_wt_forward.1} parent=5 // pred_region
      %s133 = ssub.s32 %s9, 1
      // Predicated region
      $region13: #{down_wt_forward.1} parent=11 // pred_check
        %p134 = pneg %p70
      $region14: #{down_wt_forward.1} parent=11 // pred_check_branch
        %136 = sbr.rel (%p134) target = $region16
      $region15: #{down_wt_forward.1} parent=11 // pred_region
        _
      $region16: #{down_wt_forward.1} parent=11 // pred_fallthru
        _
      // Predicated region
      $region17: #{down_wt_forward.1} parent=11 // pred_check
        %p137 = pneg %p91
      $region18: #{down_wt_forward.1} parent=11 // pred_check_branch
        %139 = sbr.rel (%p137) target = $region20
      $region19: #{down_wt_forward.1} parent=11 // pred_region
        _
      $region20: #{down_wt_forward.1} parent=11 // pred_fallthru
        _
    $region12: #{down_wt_forward.1} parent=5 // pred_fallthru
      _
    %p140 = scmp.lt.s32.totalorder %s9, 2
    // Predicated region
    $region21: #{down_wt_forward.1} parent=5 // pred_check
      %p141 = pneg %p140
    $region22: #{down_wt_forward.1} parent=5 // pred_check_branch
      %143 = sbr.rel (%p141) target = $region24
    $region23: #{down_wt_forward.1} parent=5 // pred_region
      // Predicated region
      $region25: #{down_wt_forward.1} parent=23 // pred_check
        %p144 = pneg %p43
      $region26: #{down_wt_forward.1} parent=23 // pred_check_branch
        %146 = sbr.rel (%p144) target = $region28
      $region27: #{down_wt_forward.1} parent=23 // pred_region
        %p147 = scmp.lt.s32.totalorder %s16, 1
        %s148 = scalar_select %p147, %s16, 1
        %p149 = scmp.lt.s32.totalorder %s17, 0
        %s150 = scalar_select %p149, %s17, 0
        %s151 = smul.addr %s148, 2
        %s152 = sadd.s32 %s150, %s151
        %s153 = smul.addr %s152, 8
        %s154 = scalar_lea.vmem %s0, %s153
      $region28: #{down_wt_forward.1} parent=23 // pred_fallthru
        _
    $region24: #{down_wt_forward.1} parent=5 // pred_fallthru
      _
    %p155 = scmp.le.s32.totalorder 1, %s9
    %p156 = scmp.lt.s32.totalorder %s9, 3
    %p157 = pnand %p155, %p156
    %p158 = pneg %p157
    // Predicated region
    $region29: #{down_wt_forward.1} parent=5 // pred_check
      _
    $region30: #{down_wt_forward.1} parent=5 // pred_check_branch
      %160 = sbr.rel (%p157) target = $region32
    $region31: #{down_wt_forward.1} parent=5 // pred_region
      %s161 = ssub.s32 %s9, 1
      %p162 = scmp.lt.s32.totalorder %s18, 1
      %s163 = scalar_select %p162, %s18, 1
      %p164 = scmp.lt.s32.totalorder %s19, 0
      %s165 = scalar_select %p164, %s19, 0
      %s166 = smul.addr %s163, 2
      %s167 = sadd.s32 %s165, %s166
      %s168 = smul.addr %s167, 8
      %s169 = scalar_lea.vmem %s0, %s168
      %p170 = pneg %p49
      %p171 = pneg %p46
      %p172 = pneg %p70
      %p173 = pneg %p67
      %p174 = pneg %p91
      %p175 = pneg %p88
      %p176 = pneg %p119
      %p177 = pneg %p116
      %p178 = scmp.lt.s32.totalorder %s18, 1
      %s179 = scalar_select %p178, %s18, 1
      %p180 = scmp.lt.s32.totalorder %s19, 0
      %s181 = scalar_select %p180, %s19, 0
      %s182 = sadd.s32 %s181, %s179
      %s183 = smul.addr %s182, 8
      %s184 = scalar_lea.vmem %s3, %s183
      %p185 = scmp.lt.s32.totalorder %s18, 1
      %s186 = scalar_select %p185, %s18, 1
      %p187 = scmp.lt.s32.totalorder %s19, 0
      %s188 = scalar_select %p187, %s19, 0
      %s189 = smul.addr %s186, 2
      %s190 = sadd.s32 %s188, %s189
      %s191 = smul.addr %s190, 8
      %s192 = scalar_lea.vmem %s0, %s191
      %p193 = scmp.lt.s32.totalorder %s18, 1
      %s194 = scalar_select %p193, %s18, 1
      %p195 = scmp.lt.s32.totalorder %s19, 0
      %s196 = scalar_select %p195, %s19, 0
      %s197 = sadd.s32 %s196, %s194
      %s198 = smul.addr %s197, 8
      %s199 = scalar_lea.vmem %s3, %s198
      %v200 = vld [vmem:[%s1] sm:$0xff]
      %v201 = vld [vmem:[%s192] sm:$0xff]
      %v202 = vld [vmem:[%s192 + $0x8] sm:$0xff]
      %v203 = vld [vmem:[%s2] sm:$0xff]
      %205 = vset.pattern.permute.xlu0 0
      %206 = vperm.xlu0 %205, %v203
      %v207 = vpop.permute.xlu0 %206
      %vm209 = vcmask 130048
      %v211 = vsel %vm209, %v200, 0
      %213 = vmatpush.msra.mxu0 0.0
      %214 = vmatpush.msra.mxu0 0.0
      %215 = vmatpush.msra.mxu0 0.0
      %216 = vmatpush.msra.mxu0 0.0
      %217 = vmatpush.msra.mxu0 0.0
      %218 = vmatpush.msra.mxu0 0.0
      %219 = vmatpush.msra.mxu0 0.0
      %220 = vmatpush.msra.mxu0 0.0
      %221 = vmatpush.msra.mxu0 0.0
      %222 = vmatpush.msra.mxu0 0.0
      %223 = vmatpush.msra.mxu0 0.0
      %224 = vmatpush.msra.mxu0 0.0
      %225 = vmatpush.msra.mxu0 0.0
      %226 = vmatpush.msra.mxu0 0.0
      %227 = vmatpush.msra.mxu0 %v202
      %228 = vmatpush.msra.mxu0 %v201
      %229 = vmatmul.f32.gmra.mxu0 %v211
      %v230 = vpop.f32.mrf.mxu0
      %v231 = vadd.f32 %v207, %v230
      %232 = vdwg.mxu0
      %v233 = vmax.f32 %v231, 0.0
      %vm234 = vcmask 523264
      %235 = vst.msk [vmem:[%s199] sm:$0xff] %vm234, %v233
      %p236 = scmp.lt.s32.totalorder %s18, 1
      %s237 = scalar_select %p236, %s18, 1
      %p238 = scmp.lt.s32.totalorder %s19, 0
      %s239 = scalar_select %p238, %s19, 0
      %s240 = sadd.s32 %s239, %s237
      %s241 = smul.addr %s240, 8
      %s242 = scalar_lea.vmem %s3, %s241
      // Predicated region
      $region33: #{down_wt_forward.1} parent=31 // pred_check
        %p243 = pneg %p116
      $region34: #{down_wt_forward.1} parent=31 // pred_check_branch
        %245 = sbr.rel (%p243) target = $region36
      $region35: #{down_wt_forward.1} parent=31 // pred_region
        _
      $region36: #{down_wt_forward.1} parent=31 // pred_fallthru
        _
    $region32: #{down_wt_forward.1} parent=5 // pred_fallthru
      _
    %p246 = scmp.le.s32.totalorder 2, %s9
    // Predicated region
    $region37: #{down_wt_forward.1} parent=5 // pred_check
      %p247 = pneg %p246
    $region38: #{down_wt_forward.1} parent=5 // pred_check_branch
      %249 = sbr.rel (%p247) target = $region40
    $region39: #{down_wt_forward.1} parent=5 // pred_region
      %s250 = ssub.s32 %s9, 2
      // Predicated region
      $region41: #{down_wt_forward.1} parent=39 // pred_check
        %p251 = pneg %p122
      $region42: #{down_wt_forward.1} parent=39 // pred_check_branch
        %253 = sbr.rel (%p251) target = $region44
      $region43: #{down_wt_forward.1} parent=39 // pred_region
        %p254 = scmp.lt.s32.totalorder %s20, 1
        %s255 = scalar_select %p254, %s20, 1
        %p256 = scmp.lt.s32.totalorder %s21, 0
        %s257 = scalar_select %p256, %s21, 0
        %s258 = sadd.s32 %s257, %s255
        %s259 = smul.addr %s258, 8
        %s260 = scalar_lea.vmem %s3, %s259
      $region44: #{down_wt_forward.1} parent=39 // pred_fallthru
        _
    $region40: #{down_wt_forward.1} parent=5 // pred_fallthru
      _
  $region6: #{down_wt_forward.1} parent=0 // loop_footer
    %s13 = sadd.s32 1, %s9
  $region7: #{down_wt_forward.1} parent=0 // loop_footer_branch
    %8 = sbr.rel target = $region3
  $region8: #{down_wt_forward.1} parent=0 // loop_exit
    _

</llo_original>
